<compile_context>
chip_gen: v7x
topology: tpu7x:2x2x1
jax: 0.10.0
libtpu: 0.0.40
codegen_flags: <defaults>
</compile_context>

<pallas_src>
import functools

import jax
import jax.numpy as jnp
from jax.experimental import pallas as pl
from jax.experimental.pallas import tpu as pltpu

_LANE = 128        # TPU lane width
_ROW_ALIGN = 32    # covers f32 (8), bf16 (16), int8/fp8 (32) sublane packing


def _rehu_kernel(x_ref, o_ref, *, a, b):
    # Compute in f32 regardless of storage dtype; cast back on store.
    x = x_ref[...].astype(jnp.float32)
    # Original: max( clip(sign(x) * a/2 * x^2, 0, -b), x + b )
    # For d > 0 this equals: max( min(a/2 * relu(x)^2, -b), x + b )
    # (relu(x)^2 >= 0 makes the lower clip bound implicit; avoids sign()).
    quad = jnp.minimum((0.5 * a) * jnp.square(jnp.maximum(x, 0.0)), -b)
    o_ref[...] = jnp.maximum(quad, x + b).astype(o_ref.dtype)


def _rehu_jnp(x, a, b):
    # Same math as the kernel; used only for the <128-element tail.
    xf = x.astype(jnp.float32)
    quad = jnp.minimum((0.5 * a) * jnp.square(jnp.maximum(xf, 0.0)), -b)
    return jnp.maximum(quad, xf + b).astype(x.dtype)


def _pick_block_bytes():
    """Generation-aware target block size (+ physical VMEM if known)."""
    try:
        vmem = int(pltpu.get_tpu_info().vmem_capacity_bytes)
    except Exception:
        return 2 << 20, None               # safe default: 2 MiB everywhere
    if vmem >= (96 << 20):
        # v4/v5e/v6e class (128 MiB VMEM): 2 MiB is already on the HBM-roofline
        # plateau and stays inside the 16 MiB v5e scoped default.
        return 2 << 20, vmem
    if vmem >= (48 << 20):
        # v7x class (64 MiB VMEM, ~3.2 TB/s HBM): bigger blocks amortize the
        # ~0.35 us per-grid-step overhead.
        return 8 << 20, vmem
    return 1 << 20, vmem                   # anything smaller: be conservative


def _pick_tile_rows(rows, lane, itemsize, target_block_bytes):
    """32-row-aligned tile giving >= 4 near-equal blocks when there is enough
    work; prefer a tile that divides rows exactly (no ragged last block)."""
    if rows <= 2 * _ROW_ALIGN:
        return rows                        # tiny slab: single full-extent block
    target_rows = max(_ROW_ALIGN, target_block_bytes // (lane * itemsize))
    # At least 4 blocks (keeps DMA/compute overlapped and both v7x TCs busy),
    # more if needed to respect the target block size; keep the count even so
    # the "parallel" axis splits evenly across two TensorCores.
    num_blocks = max(4, pl.cdiv(rows, target_rows))
    if num_blocks % 2:
        num_blocks += 1
    tile_rows = pl.cdiv(pl.cdiv(rows, num_blocks), _ROW_ALIGN) * _ROW_ALIGN
    tile_rows = min(tile_rows, rows)
    # Prefer an exact divisor of rows, searching down to ~half the target so
    # blocks stay near-equal in size.
    t = tile_rows
    floor = max(_ROW_ALIGN, tile_rows // 2)
    while t >= floor:
        if rows % t == 0:
            return t
        t -= _ROW_ALIGN
    return tile_rows


def rehu(x, d):
    """Apply ReHU elementwise. x: any-shape float array (e.g. NCHW). d > 0."""
    if d <= 0:
        raise ValueError("ReHU requires d > 0 (the algebraic form assumes -b >= 0).")
    a = 1.0 / d
    b = -d / 2.0

    orig_shape = x.shape
    orig_dtype = x.dtype
    n = x.size
    if n == 0:
        return x

    x_flat = jnp.ravel(x)
    itemsize = jnp.dtype(orig_dtype).itemsize

    n_bulk = (n // _LANE) * _LANE          # 128-aligned bulk (kernel path)
    n_tail = n - n_bulk                    # < 128 leftover elements (jnp path)

    pieces = []
    if n_bulk:
        # Widest lane-dense column count that divides the bulk exactly.
        lane = _LANE
        for cand in (2048, 1024, 512, 256):
            if n_bulk % cand == 0:
                lane = cand
                break
        rows = n_bulk // lane
        bulk = x_flat[:n_bulk] if n_tail else x_flat
        x2d = bulk.reshape(rows, lane)

        target_block_bytes, vmem_cap = _pick_block_bytes()
        tile_rows = _pick_tile_rows(rows, lane, itemsize, target_block_bytes)
        grid = (pl.cdiv(rows, tile_rows),)

        # in + out, double-buffered -> ~4x block bytes, plus headroom.
        block_bytes = tile_rows * lane * itemsize
        vmem_limit = max(4 * block_bytes + (8 << 20), 16 << 20)
        if vmem_cap is not None:
            vmem_limit = min(vmem_limit, vmem_cap - (4 << 20))

        kernel = functools.partial(_rehu_kernel, a=a, b=b)
        out2d = pl.pallas_call(
            kernel,
            out_shape=jax.ShapeDtypeStruct((rows, lane), orig_dtype),
            grid=grid,
            in_specs=[pl.BlockSpec((tile_rows, lane), lambda i: (i, 0))],
            out_specs=pl.BlockSpec((tile_rows, lane), lambda i: (i, 0)),
            compiler_params=pltpu.CompilerParams(
                dimension_semantics=("parallel",),
                vmem_limit_bytes=int(vmem_limit),
            ),
            cost_estimate=pl.CostEstimate(
                flops=5 * n_bulk,
                transcendentals=0,
                bytes_accessed=2 * n_bulk * itemsize,
            ),
        )(x2d)
        pieces.append(out2d.reshape(-1))

    if n_tail:
        # Tiny epilogue instead of materializing a padded copy + output slice.
        pieces.append(_rehu_jnp(x_flat[n_bulk:], a, b))

    out_flat = pieces[0] if len(pieces) == 1 else jnp.concatenate(pieces)
    return out_flat.reshape(orig_shape)


def rehu_reference(x, d):
    a = 1.0 / d
    b = -d / 2.0
    quad = jnp.sign(x) * (a / 2.0) * x ** 2
    return jnp.maximum(jnp.clip(quad, 0.0, -b), x + b)


if __name__ == "__main__":
    key = jax.random.PRNGKey(0)
    d = 1.0  # module parameter (must be > 0)

    # Small NCHW input consistent with typical conv usage (size % 128 == 0).
    x = jax.random.normal(key, (2, 4, 16, 16), dtype=jnp.float32) * 2.0
    out = jax.block_until_ready(rehu(x, d))
    ref = rehu_reference(x, d)
    assert out.shape == x.shape and out.dtype == x.dtype
    assert jnp.allclose(out, ref, atol=1e-6, rtol=1e-6), "mismatch vs reference"

    # Non-128-divisible size exercises the bulk-kernel + jnp-tail path.
    x2 = jax.random.normal(jax.random.PRNGKey(1), (3, 5, 7, 9), dtype=jnp.float32) * 2.0
    out2 = jax.block_until_ready(rehu(x2, d))
    ref2 = rehu_reference(x2, d)
    assert out2.shape == x2.shape and out2.dtype == x2.dtype
    assert jnp.allclose(out2, ref2, atol=1e-6, rtol=1e-6), "mismatch vs reference (tail path)"

    print("KERNEL_OK")
</pallas_src>

<mosaic_0001>
module attributes {stable_mosaic.version = 11 : i64} {
  func.func @_rehu_kernel(%arg0: i32, %arg1: memref<1x2048xf32, #tpu.memory_space<vmem>>, %arg2: memref<1x2048xf32, #tpu.memory_space<vmem>>) attributes {dimension_semantics = [#tpu.dimension_semantics<parallel>], iteration_bounds = array<i64: 1>, scalar_prefetch = 0 : i64, scratch_operands = 0 : i64, tpu.core_type = #tpu.core_type<tc>, window_params = [{transform_indices = @transform_0, window_bounds = array<i64: 1, 2048>}, {transform_indices = @transform_1, window_bounds = array<i64: 1, 2048>}]} {
    %c0 = arith.constant 0 : index
    %c0_0 = arith.constant 0 : index
    %0 = vector.load %arg1[%c0, %c0_0] : memref<1x2048xf32, #tpu.memory_space<vmem>>, vector<1x2048xf32>
    %cst = arith.constant 0.000000e+00 : f32
    %1 = vector.broadcast %cst : f32 to vector<1x2048xf32>
    %2 = arith.maximumf %0, %1 : vector<1x2048xf32>
    %3 = arith.mulf %2, %2 : vector<1x2048xf32>
    %cst_1 = arith.constant 5.000000e-01 : f32
    %4 = vector.broadcast %cst_1 : f32 to vector<1x2048xf32>
    %5 = arith.mulf %4, %3 : vector<1x2048xf32>
    %cst_2 = arith.constant 5.000000e-01 : f32
    %6 = vector.broadcast %cst_2 : f32 to vector<1x2048xf32>
    %7 = arith.minimumf %5, %6 : vector<1x2048xf32>
    %cst_3 = arith.constant -5.000000e-01 : f32
    %8 = vector.broadcast %cst_3 : f32 to vector<1x2048xf32>
    %9 = arith.addf %0, %8 : vector<1x2048xf32>
    %10 = arith.maximumf %7, %9 : vector<1x2048xf32>
    %c0_4 = arith.constant 0 : index
    %c0_5 = arith.constant 0 : index
    %11 = vector.load %arg2[%c0_4, %c0_5] : memref<1x2048xf32, #tpu.memory_space<vmem>>, vector<1x2048xf32>
    tpu.vector_store %arg2[%c0_4, %c0_5], %10 {strides = array<i32>} : memref<1x2048xf32, #tpu.memory_space<vmem>>, vector<1x2048xf32>,
    return
  }
  func.func @transform_0(%arg0: i32) -> (i32, i32) {
    %c0_i32 = arith.constant 0 : i32
    %c0_i32_0 = arith.constant 0 : i32
    return %arg0, %c0_i32 : i32, i32
  }
  func.func @transform_1(%arg0: i32) -> (i32, i32) {
    %c0_i32 = arith.constant 0 : i32
    %c0_i32_0 = arith.constant 0 : i32
    return %arg0, %c0_i32 : i32, i32
  }
}

</mosaic_0001>

<llo_original>
// kernel: tpu_custom_call.1
$region0: #{tpu_custom_call.1}
  #allocation0 [shape = 'u32[]', space=smem, size = 0x4, offset = 0x4, fixed_abs, tag = 'smem constant byte address 0x4 - core index']
  #allocation1 [shape = 'u32[144,128]{1,0:T(1,128)}', space=vmem, size = 0x12000, scoped, tag = 'internal scratch']
  %s0 = inlined_call_operand.hbm [shape: f32[1,2048], index: 0, kind: input, shape index: {}]
  %s1 = inlined_call_operand.hbm [shape: f32[1,2048], index: 1, kind: output, shape index: {}]
  %s2 = sld [smem:[#allocation0]]
  $region18: #{tpu_custom_call.1} parent=0
    _
  %s4 = ssub.s32 1, %s2
  %s5 = scalar_select 0, %s4, %s2
  $region1: #{tpu_custom_call.1} parent=0
    #allocation2 [shape = 'u8[8192]{0}', space=vmem, size = 0x2000, scoped, tag = 'input window, operand 0, single buffered']
    #allocation3 [shape = 's32[1]{0}', space=sflag, size = 0x4, scoped, tag = 'scoped memory for tpu_custom_call.1']
    #allocation4 [shape = 's32[1]{0}', space=sflag, size = 0x4, scoped, tag = 'scoped memory for tpu_custom_call.1']
    #allocation5 [shape = 'u8[8192]{0}', space=vmem, size = 0x2000, scoped, tag = 'output window, operand 0, single buffered']
    %6 = vsyncpa [#allocation3], 0
    %7 = vsyncpa [#allocation4], 0
    // Predicated region
    $region2: #{tpu_custom_call.1} parent=1 // pred_check
      _
    $region3: #{tpu_custom_call.1} parent=1 // pred_check_branch
      %9 = sbr.rel (0) target = $region5
    $region4: #{tpu_custom_call.1} parent=1 // pred_region
      %s11 = ssub.s32 256, 256
      %12 = vsyncadd [#allocation3], %s11
      %s14 = sshll.u32 [#allocation2], 4
      %s15 = int_to_ptr.vmem [resolvable:$true] %s14
      %17 = dma.hbm_to_vmem [thread:$0]  %s0, 256, %s15, [#allocation3]
    $region5: #{tpu_custom_call.1} parent=1 // pred_fallthru
      _
    // Predicated region
    $region6: #{tpu_custom_call.1} parent=1 // pred_check
      _
    $region7: #{tpu_custom_call.1} parent=1 // pred_check_branch
      %19 = sbr.rel (0) target = $region9
    $region8: #{tpu_custom_call.1} parent=1 // pred_region
      %20 = dma.done [#allocation3], 256
    $region9: #{tpu_custom_call.1} parent=1 // pred_fallthru
      _
    %v21 = vld [vmem:[#allocation2] sm:$0xff]
    %v22 = vld [vmem:[#allocation2 + $0x8] sm:$0xff]
    %v23 = vmax.f32 %v21, 0.0
    %v24 = vmax.f32 %v22, 0.0
    %v25 = vmul.f32 %v23, %v23
    %v26 = vmul.f32 %v24, %v24
    %v27 = vmul.f32 %v25, 0.5
    %v28 = vmul.f32 %v26, 0.5
    %v29 = vmin.f32 %v27, 0.5
    %v30 = vmin.f32 %v28, 0.5
    %v31 = vadd.f32 %v21, -0.5
    %v32 = vadd.f32 %v22, -0.5
    %v33 = vmax.f32 %v29, %v31
    %v34 = vmax.f32 %v30, %v32
    %35 = vst [vmem:[#allocation5] sm:$0xff] %v33
    %36 = vst [vmem:[#allocation5 + $0x8] sm:$0xff] %v34
    // Predicated region
    $region10: #{tpu_custom_call.1} parent=1 // pred_check
      _
    $region11: #{tpu_custom_call.1} parent=1 // pred_check_branch
      %38 = sbr.rel (0) target = $region13
    $region12: #{tpu_custom_call.1} parent=1 // pred_region
      %s40 = ssub.s32 256, 256
      %41 = vsyncadd [#allocation4], %s40
      %s43 = sshll.u32 [#allocation5], 4
      %s44 = int_to_ptr.vmem [resolvable:$true] %s43
      %46 = dma.vmem_to_hbm [thread:$0]  %s44, 256, %s1, [#allocation4]
    $region13: #{tpu_custom_call.1} parent=1 // pred_fallthru
      _
    // Predicated region
    $region14: #{tpu_custom_call.1} parent=1 // pred_check
      _
    $region15: #{tpu_custom_call.1} parent=1 // pred_check_branch
      %48 = sbr.rel (0) target = $region17
    $region16: #{tpu_custom_call.1} parent=1 // pred_region
      %49 = dma.done [#allocation4], 256
    $region17: #{tpu_custom_call.1} parent=1 // pred_fallthru
      _
    %50 = vsyncpa [#allocation3], 1
    %51 = vsyncpa [#allocation4], 1

</llo_original>
